<compile_context>
chip_gen: v7x
topology: tpu7x:2x2x1
jax: 0.10.0
libtpu: 0.0.40
codegen_flags: <defaults>
</compile_context>

<pallas_src>
from typing import NamedTuple, Optional

import jax
import jax.numpy as jnp
from jax.experimental import pallas as pl
from jax.experimental.pallas import tpu as pltpu


def _round_up(x, m):
    return ((x + m - 1) // m) * m


def _nbytes(a):
    return int(a.size) * int(jnp.dtype(a.dtype).itemsize)


class EmbedReturn(NamedTuple):
    emb: Optional[jax.Array] = None
    time_emb: Optional[jax.Array] = None
    style: Optional[jax.Array] = None


# -----------------------------------------------------------------------------
# Kernels
# -----------------------------------------------------------------------------
def _embed_cat_style_kernel(t_ref, p_ref, c_ref,
                            w1t_ref, w1p_ref, b1c_ref, w2c_ref, b2c_ref,
                            w1s_ref, b1s_ref, w2s_ref, b2s_ref,
                            cat_ref, sty_ref):
    wdt = w1t_ref.dtype

    # ---- time + pos branches, fused block-diagonally over the hidden dim ----
    # Two MXU passes into one f32 accumulator (inputs arrive as separate refs,
    # so no wrapper-side concat is needed).
    hc = jnp.dot(t_ref[...].astype(wdt), w1t_ref[...],
                 preferred_element_type=jnp.float32)
    hc = hc + jnp.dot(p_ref[...].astype(wdt), w1p_ref[...],
                      preferred_element_type=jnp.float32)
    hc = hc + b1c_ref[...]                                   # f32 bias
    # SiLU in f32 (exp on the EUP, exact reciprocal keeps the reference check tight).
    hc = hc * pl.reciprocal(1.0 + jnp.exp(-hc), approx=False)
    cat = jnp.dot(hc.astype(wdt), w2c_ref[...],
                  preferred_element_type=jnp.float32) + b2c_ref[...]
    cat_ref[...] = cat.astype(cat_ref.dtype)                 # = torch.cat([time, pos], 1)

    # ---- style branch ----
    hs = jnp.dot(c_ref[...].astype(wdt), w1s_ref[...],
                 preferred_element_type=jnp.float32)
    hs = hs + b1s_ref[...]
    hs = hs * pl.reciprocal(1.0 + jnp.exp(-hs), approx=False)
    sty = jnp.dot(hs.astype(wdt), w2s_ref[...],
                  preferred_element_type=jnp.float32) + b2s_ref[...]
    sty_ref[...] = sty.astype(sty_ref.dtype)


def _embed_cat_kernel(t_ref, p_ref,
                      w1t_ref, w1p_ref, b1c_ref, w2c_ref, b2c_ref,
                      cat_ref):
    wdt = w1t_ref.dtype
    hc = jnp.dot(t_ref[...].astype(wdt), w1t_ref[...],
                 preferred_element_type=jnp.float32)
    hc = hc + jnp.dot(p_ref[...].astype(wdt), w1p_ref[...],
                      preferred_element_type=jnp.float32)
    hc = hc + b1c_ref[...]
    hc = hc * pl.reciprocal(1.0 + jnp.exp(-hc), approx=False)
    cat = jnp.dot(hc.astype(wdt), w2c_ref[...],
                  preferred_element_type=jnp.float32) + b2c_ref[...]
    cat_ref[...] = cat.astype(cat_ref.dtype)


_VMEM = pl.BlockSpec(memory_space=pltpu.MemorySpace.VMEM)


def _fused_embed_with_style(t, p, c, cat_w, sty_w, out_dtype):
    w1t, w1p, b1c, w2c, b2c = cat_w
    w1s, b1s, w2s, b2s = sty_w
    B = p.shape[0]
    Hc, Nc = w1t.shape[1], w2c.shape[1]
    Hs, Ns = w1s.shape[1], w2s.shape[1]
    operands = (t, p, c, w1t, w1p, b1c, w2c, b2c, w1s, b1s, w2s, b2s)
    cost = pl.CostEstimate(
        flops=int(2 * B * (t.shape[1] * Hc + p.shape[1] * Hc + Hc * Nc
                           + c.shape[1] * Hs + Hs * Ns)),
        transcendentals=int(B * (Hc + Hs)),
        bytes_accessed=int(sum(_nbytes(a) for a in operands)
                           + B * (Nc + Ns) * jnp.dtype(out_dtype).itemsize),
    )
    return pl.pallas_call(
        _embed_cat_style_kernel,
        out_shape=(jax.ShapeDtypeStruct((B, Nc), out_dtype),
                   jax.ShapeDtypeStruct((B, Ns), out_dtype)),
        in_specs=[_VMEM] * len(operands),
        out_specs=(_VMEM, _VMEM),
        cost_estimate=cost,
    )(*operands)


def _fused_embed_cat_only(t, p, cat_w, out_dtype):
    w1t, w1p, b1c, w2c, b2c = cat_w
    B = p.shape[0]
    Hc, Nc = w1t.shape[1], w2c.shape[1]
    operands = (t, p, w1t, w1p, b1c, w2c, b2c)
    cost = pl.CostEstimate(
        flops=int(2 * B * (t.shape[1] * Hc + p.shape[1] * Hc + Hc * Nc)),
        transcendentals=int(B * Hc),
        bytes_accessed=int(sum(_nbytes(a) for a in operands)
                           + B * Nc * jnp.dtype(out_dtype).itemsize),
    )
    return pl.pallas_call(
        _embed_cat_kernel,
        out_shape=jax.ShapeDtypeStruct((B, Nc), out_dtype),
        in_specs=[_VMEM] * len(operands),
        out_specs=_VMEM,
        cost_estimate=cost,
    )(*operands)


# -----------------------------------------------------------------------------
# Parameter init (nn.Linear-style) and one-time packing
# -----------------------------------------------------------------------------
def init_linear(key, d_in, d_out, dtype=jnp.float32):
    kw, kb = jax.random.split(key)
    bound = 1.0 / (d_in ** 0.5)
    w = jax.random.uniform(kw, (d_in, d_out), dtype, minval=-bound, maxval=bound)
    b = jax.random.uniform(kb, (1, d_out), dtype, minval=-bound, maxval=bound)
    return w, b


def init_time_style_seperate_embed(key, time_channels, time_out_channels,
                                   style_channels, dtype=jnp.float32):
    half = time_out_channels // 2
    keys = jax.random.split(key, 6)
    params = {
        "time_embed": {
            "w1b1": init_linear(keys[0], time_channels, half, dtype),
            "w2b2": init_linear(keys[1], half, half, dtype),
        },
        "pos_embed": {
            "w1b1": init_linear(keys[2], 128, half, dtype),
            "w2b2": init_linear(keys[3], half, half, dtype),
        },
    }
    if style_channels == time_out_channels:
        params["style"] = None  # nn.Identity()
    else:
        params["style"] = {
            "w1b1": init_linear(keys[4], style_channels, time_out_channels, dtype),
            "w2b2": init_linear(keys[5], time_out_channels, time_out_channels, dtype),
        }
    return params


def pack_fused_params(params, time_channels, time_out_channels, style_channels,
                      param_dtype=jnp.bfloat16):
    """Pack the branch MLPs ONCE at init time.

    * cat path  : time & pos branches fused block-diagonally over a hidden dim
                  padded to a 128-lane multiple; W2 directly produces the
                  torch.cat([time_emb, pos_emb], 1) layout (time cols first).
    * style path: its own padded hidden dim (skipped entirely when cond is None
                  or the module uses nn.Identity).
    Weights are stored in `param_dtype` (bf16 = MXU-native on v6e/v7x); biases
    stay f32 so the bias-add / SiLU chain remains f32 (v5e has no bf16 VPU/EUP).
    """
    half = time_out_channels // 2
    has_style_mlp = params["style"] is not None

    Hc = _round_up(2 * half, 128)
    Nc = 2 * half
    (tw1, tb1) = params["time_embed"]["w1b1"]
    (tw2, tb2) = params["time_embed"]["w2b2"]
    (pw1, pb1) = params["pos_embed"]["w1b1"]
    (pw2, pb2) = params["pos_embed"]["w2b2"]

    w1t = jnp.zeros((time_channels, Hc), param_dtype)
    w1t = w1t.at[:, :half].set(tw1.astype(param_dtype))
    w1p = jnp.zeros((128, Hc), param_dtype)
    w1p = w1p.at[:, half:2 * half].set(pw1.astype(param_dtype))
    b1c = jnp.zeros((1, Hc), jnp.float32)
    b1c = b1c.at[:, :half].set(tb1.astype(jnp.float32))
    b1c = b1c.at[:, half:2 * half].set(pb1.astype(jnp.float32))
    w2c = jnp.zeros((Hc, Nc), param_dtype)
    w2c = w2c.at[:half, :half].set(tw2.astype(param_dtype))
    w2c = w2c.at[half:2 * half, half:2 * half].set(pw2.astype(param_dtype))
    b2c = jnp.zeros((1, Nc), jnp.float32)
    b2c = b2c.at[:, :half].set(tb2.astype(jnp.float32))
    b2c = b2c.at[:, half:2 * half].set(pb2.astype(jnp.float32))

    packed = {
        "half": half,
        "time_in": time_channels,
        "has_style_mlp": has_style_mlp,
        "cat": (w1t, w1p, b1c, w2c, b2c),
        "style": None,
    }

    if has_style_mlp:
        Hs = _round_up(time_out_channels, 128)
        Ns = time_out_channels
        (sw1, sb1) = params["style"]["w1b1"]
        (sw2, sb2) = params["style"]["w2b2"]
        w1s = jnp.zeros((style_channels, Hs), param_dtype)
        w1s = w1s.at[:, :time_out_channels].set(sw1.astype(param_dtype))
        b1s = jnp.zeros((1, Hs), jnp.float32)
        b1s = b1s.at[:, :time_out_channels].set(sb1.astype(jnp.float32))
        w2s = jnp.zeros((Hs, Ns), param_dtype)
        w2s = w2s.at[:time_out_channels, :].set(sw2.astype(param_dtype))
        b2s = sb2.astype(jnp.float32)
        packed["style"] = (w1s, b1s, w2s, b2s)
    return packed


# -----------------------------------------------------------------------------
# Forward — matches EmbedReturn(emb=style, time_emb=cat([time,pos],1), style=style)
# -----------------------------------------------------------------------------
def time_style_seperate_embed_forward(packed, time_emb=None, cond=None,
                                      pos_emb=None, **kwargs):
    if pos_emb is None:
        raise ValueError("pos_emb is required")
    if time_emb is None:
        # TODO(synk): the reference module would itself fail at
        # torch.cat([None, pos_emb], dim=1); mirror that by rejecting None here.
        raise ValueError("time_emb is required (reference torch.cat would fail on None)")

    out_dtype = pos_emb.dtype
    run_style = packed["has_style_mlp"] and cond is not None

    if run_style:
        cat, style = _fused_embed_with_style(time_emb, pos_emb, cond,
                                             packed["cat"], packed["style"],
                                             out_dtype)
    else:
        cat = _fused_embed_cat_only(time_emb, pos_emb, packed["cat"], out_dtype)
        # style MLP with cond=None -> None; nn.Identity -> cond (possibly None).
        style = None if packed["has_style_mlp"] else cond

    # NOTE: emb and style are intentionally the same tensor in the original module.
    return EmbedReturn(emb=style, time_emb=cat, style=style)


# -----------------------------------------------------------------------------
# Pure-JAX reference for correctness checking
# -----------------------------------------------------------------------------
def _mlp2_ref(x, w1, b1, w2, b2):
    hp = jax.lax.Precision.HIGHEST
    h = jnp.dot(x, w1, precision=hp) + b1
    h = h * jax.nn.sigmoid(h)
    return jnp.dot(h, w2, precision=hp) + b2


if __name__ == "__main__":
    key = jax.random.PRNGKey(0)

    batch = 2                 # small per the test spec; real callers should batch B>=8
    time_channels = 32
    time_out_channels = 64    # -> half = 32
    style_channels = 48       # != time_out_channels -> style MLP branch

    k_param, k_param_id, k_t, k_p, k_c, k_cid = jax.random.split(key, 6)
    params = init_time_style_seperate_embed(
        k_param, time_channels, time_out_channels, style_channels)

    time_in = jax.random.normal(k_t, (batch, time_channels), jnp.float32)
    pos_in = jax.random.normal(k_p, (batch, 128), jnp.float32)
    cond_in = jax.random.normal(k_c, (batch, style_channels), jnp.float32)

    # Pure-JAX per-branch reference.
    t_ref = _mlp2_ref(time_in, *params["time_embed"]["w1b1"], *params["time_embed"]["w2b2"])
    p_ref = _mlp2_ref(pos_in, *params["pos_embed"]["w1b1"], *params["pos_embed"]["w2b2"])
    s_ref = _mlp2_ref(cond_in, *params["style"]["w1b1"], *params["style"]["w2b2"])
    cat_ref = jnp.concatenate([t_ref, p_ref], axis=1)

    # ---- f32-packed weights: correctness path ----------------------------------
    fused32 = pack_fused_params(params, time_channels, time_out_channels,
                                style_channels, param_dtype=jnp.float32)
    out = time_style_seperate_embed_forward(fused32, time_emb=time_in,
                                            cond=cond_in, pos_emb=pos_in)
    jax.block_until_ready((out.time_emb, out.style))
    assert out.time_emb.shape == (batch, time_out_channels)
    assert out.style.shape == (batch, time_out_channels)
    assert out.emb is out.style
    # Expected agreement ~1e-6 (packing adds exact zeros); tolerance kept loose so
    # the check is robust to backend matmul-precision defaults.
    assert jnp.allclose(out.time_emb, cat_ref, atol=1e-2, rtol=1e-2)
    assert jnp.allclose(out.style, s_ref, atol=1e-2, rtol=1e-2)

    # ---- bf16-packed weights (MXU-native fast path on v6e/v7x): loose check ----
    fused16 = pack_fused_params(params, time_channels, time_out_channels,
                                style_channels, param_dtype=jnp.bfloat16)
    out16 = time_style_seperate_embed_forward(fused16, time_emb=time_in,
                                              cond=cond_in, pos_emb=pos_in)
    jax.block_until_ready((out16.time_emb, out16.style))
    assert jnp.allclose(out16.time_emb, cat_ref, atol=1e-1, rtol=1e-1)
    assert jnp.allclose(out16.style, s_ref, atol=1e-1, rtol=1e-1)

    # ---- cond=None: style branch skipped entirely (no dead MXU work) -----------
    out_nc = time_style_seperate_embed_forward(fused32, time_emb=time_in,
                                               cond=None, pos_emb=pos_in)
    jax.block_until_ready(out_nc.time_emb)
    assert out_nc.style is None and out_nc.emb is None
    assert jnp.allclose(out_nc.time_emb, cat_ref, atol=1e-2, rtol=1e-2)

    # ---- style_channels == time_out_channels: nn.Identity() style --------------
    params_id = init_time_style_seperate_embed(
        k_param_id, time_channels, time_out_channels, time_out_channels)
    fused_id = pack_fused_params(params_id, time_channels, time_out_channels,
                                 time_out_channels, param_dtype=jnp.float32)
    cond_id = jax.random.normal(k_cid, (batch, time_out_channels), jnp.float32)
    out_id = time_style_seperate_embed_forward(fused_id, time_emb=time_in,
                                               cond=cond_id, pos_emb=pos_in)
    jax.block_until_ready(out_id.time_emb)
    t_ref2 = _mlp2_ref(time_in, *params_id["time_embed"]["w1b1"], *params_id["time_embed"]["w2b2"])
    p_ref2 = _mlp2_ref(pos_in, *params_id["pos_embed"]["w1b1"], *params_id["pos_embed"]["w2b2"])
    assert out_id.style is cond_id
    assert jnp.allclose(out_id.time_emb, jnp.concatenate([t_ref2, p_ref2], axis=1),
                        atol=1e-2, rtol=1e-2)

    print("KERNEL_OK")
</pallas_src>

<mosaic_0001>
module attributes {stable_mosaic.version = 11 : i64} {
  func.func @_embed_cat_style_kernel(%arg0: memref<2x32xf32, #tpu.memory_space<vmem>>, %arg1: memref<2x128xf32, #tpu.memory_space<vmem>>, %arg2: memref<2x48xf32, #tpu.memory_space<vmem>>, %arg3: memref<32x128xf32, #tpu.memory_space<vmem>>, %arg4: memref<128x128xf32, #tpu.memory_space<vmem>>, %arg5: memref<1x128xf32, #tpu.memory_space<vmem>>, %arg6: memref<128x64xf32, #tpu.memory_space<vmem>>, %arg7: memref<1x64xf32, #tpu.memory_space<vmem>>, %arg8: memref<48x128xf32, #tpu.memory_space<vmem>>, %arg9: memref<1x128xf32, #tpu.memory_space<vmem>>, %arg10: memref<128x64xf32, #tpu.memory_space<vmem>>, %arg11: memref<1x64xf32, #tpu.memory_space<vmem>>, %arg12: memref<2x64xf32, #tpu.memory_space<vmem>>, %arg13: memref<2x64xf32, #tpu.memory_space<vmem>>) attributes {dimension_semantics = [], scalar_prefetch = 0 : i64, scratch_operands = 0 : i64, tpu.core_type = #tpu.core_type<tc>} {
    %c0 = arith.constant 0 : index
    %c0_0 = arith.constant 0 : index
    %0 = vector.load %arg0[%c0, %c0_0] : memref<2x32xf32, #tpu.memory_space<vmem>>, vector<2x32xf32>
    %c0_1 = arith.constant 0 : index
    %c0_2 = arith.constant 0 : index
    %1 = vector.load %arg3[%c0_1, %c0_2] : memref<32x128xf32, #tpu.memory_space<vmem>>, vector<32x128xf32>
    %cst = arith.constant dense<0.000000e+00> : vector<2x128xf32>
    %2 = tpu.matmul %0, %1, %cst {dimension_numbers = #tpu.dot_dimension_numbers<[1], [0], [0], [1], [0, 0, 1, 1], [], []>} : vector<2x32xf32>, vector<32x128xf32>, vector<2x128xf32> -> vector<2x128xf32>
    %c0_3 = arith.constant 0 : index
    %c0_4 = arith.constant 0 : index
    %3 = vector.load %arg1[%c0_3, %c0_4] : memref<2x128xf32, #tpu.memory_space<vmem>>, vector<2x128xf32>
    %c0_5 = arith.constant 0 : index
    %c0_6 = arith.constant 0 : index
    %4 = vector.load %arg4[%c0_5, %c0_6] : memref<128x128xf32, #tpu.memory_space<vmem>>, vector<128x128xf32>
    %cst_7 = arith.constant dense<0.000000e+00> : vector<2x128xf32>
    %5 = tpu.matmul %3, %4, %cst_7 {dimension_numbers = #tpu.dot_dimension_numbers<[1], [0], [0], [1], [0, 0, 1, 1], [], []>} : vector<2x128xf32>, vector<128x128xf32>, vector<2x128xf32> -> vector<2x128xf32>
    %6 = arith.addf %2, %5 : vector<2x128xf32>
    %c0_8 = arith.constant 0 : index
    %c0_9 = arith.constant 0 : index
    %7 = vector.load %arg5[%c0_8, %c0_9] : memref<1x128xf32, #tpu.memory_space<vmem>>, vector<1x128xf32>
    %8 = vector.broadcast %7 : vector<1x128xf32> to vector<2x128xf32>
    %9 = arith.addf %6, %8 : vector<2x128xf32>
    %cst_10 = arith.constant 0.000000e+00 : f32
    %10 = vector.broadcast %cst_10 : f32 to vector<2x128xf32>
    %11 = arith.subf %10, %9 : vector<2x128xf32>
    %12 = math.exp %11 : vector<2x128xf32>
    %cst_11 = arith.constant 1.000000e+00 : f32
    %13 = vector.broadcast %cst_11 : f32 to vector<2x128xf32>
    %14 = arith.addf %13, %12 : vector<2x128xf32>
    %15 = tpu.reciprocal %14 : vector<2x128xf32> -> vector<2x128xf32>
    %16 = arith.mulf %9, %15 : vector<2x128xf32>
    %c0_12 = arith.constant 0 : index
    %c0_13 = arith.constant 0 : index
    %17 = vector.load %arg6[%c0_12, %c0_13] : memref<128x64xf32, #tpu.memory_space<vmem>>, vector<128x64xf32>
    %cst_14 = arith.constant dense<0.000000e+00> : vector<2x64xf32>
    %18 = tpu.matmul %16, %17, %cst_14 {dimension_numbers = #tpu.dot_dimension_numbers<[1], [0], [0], [1], [0, 0, 1, 1], [], []>} : vector<2x128xf32>, vector<128x64xf32>, vector<2x64xf32> -> vector<2x64xf32>
    %c0_15 = arith.constant 0 : index
    %c0_16 = arith.constant 0 : index
    %19 = vector.load %arg7[%c0_15, %c0_16] : memref<1x64xf32, #tpu.memory_space<vmem>>, vector<1x64xf32>
    %20 = vector.broadcast %19 : vector<1x64xf32> to vector<2x64xf32>
    %21 = arith.addf %18, %20 : vector<2x64xf32>
    %c0_17 = arith.constant 0 : index
    %c0_18 = arith.constant 0 : index
    %22 = vector.load %arg12[%c0_17, %c0_18] : memref<2x64xf32, #tpu.memory_space<vmem>>, vector<2x64xf32>
    tpu.vector_store %arg12[%c0_17, %c0_18], %21 {strides = array<i32>} : memref<2x64xf32, #tpu.memory_space<vmem>>, vector<2x64xf32>,
    %c0_19 = arith.constant 0 : index
    %c0_20 = arith.constant 0 : index
    %23 = vector.load %arg2[%c0_19, %c0_20] : memref<2x48xf32, #tpu.memory_space<vmem>>, vector<2x48xf32>
    %c0_21 = arith.constant 0 : index
    %c0_22 = arith.constant 0 : index
    %24 = vector.load %arg8[%c0_21, %c0_22] : memref<48x128xf32, #tpu.memory_space<vmem>>, vector<48x128xf32>
    %cst_23 = arith.constant dense<0.000000e+00> : vector<2x128xf32>
    %25 = tpu.matmul %23, %24, %cst_23 {dimension_numbers = #tpu.dot_dimension_numbers<[1], [0], [0], [1], [0, 0, 1, 1], [], []>} : vector<2x48xf32>, vector<48x128xf32>, vector<2x128xf32> -> vector<2x128xf32>
    %c0_24 = arith.constant 0 : index
    %c0_25 = arith.constant 0 : index
    %26 = vector.load %arg9[%c0_24, %c0_25] : memref<1x128xf32, #tpu.memory_space<vmem>>, vector<1x128xf32>
    %27 = vector.broadcast %26 : vector<1x128xf32> to vector<2x128xf32>
    %28 = arith.addf %25, %27 : vector<2x128xf32>
    %cst_26 = arith.constant 0.000000e+00 : f32
    %29 = vector.broadcast %cst_26 : f32 to vector<2x128xf32>
    %30 = arith.subf %29, %28 : vector<2x128xf32>
    %31 = math.exp %30 : vector<2x128xf32>
    %cst_27 = arith.constant 1.000000e+00 : f32
    %32 = vector.broadcast %cst_27 : f32 to vector<2x128xf32>
    %33 = arith.addf %32, %31 : vector<2x128xf32>
    %34 = tpu.reciprocal %33 : vector<2x128xf32> -> vector<2x128xf32>
    %35 = arith.mulf %28, %34 : vector<2x128xf32>
    %c0_28 = arith.constant 0 : index
    %c0_29 = arith.constant 0 : index
    %36 = vector.load %arg10[%c0_28, %c0_29] : memref<128x64xf32, #tpu.memory_space<vmem>>, vector<128x64xf32>
    %cst_30 = arith.constant dense<0.000000e+00> : vector<2x64xf32>
    %37 = tpu.matmul %35, %36, %cst_30 {dimension_numbers = #tpu.dot_dimension_numbers<[1], [0], [0], [1], [0, 0, 1, 1], [], []>} : vector<2x128xf32>, vector<128x64xf32>, vector<2x64xf32> -> vector<2x64xf32>
    %c0_31 = arith.constant 0 : index
    %c0_32 = arith.constant 0 : index
    %38 = vector.load %arg11[%c0_31, %c0_32] : memref<1x64xf32, #tpu.memory_space<vmem>>, vector<1x64xf32>
    %39 = vector.broadcast %38 : vector<1x64xf32> to vector<2x64xf32>
    %40 = arith.addf %37, %39 : vector<2x64xf32>
    %c0_33 = arith.constant 0 : index
    %c0_34 = arith.constant 0 : index
    %41 = vector.load %arg13[%c0_33, %c0_34] : memref<2x64xf32, #tpu.memory_space<vmem>>, vector<2x64xf32>
    tpu.vector_store %arg13[%c0_33, %c0_34], %40 {strides = array<i32>} : memref<2x64xf32, #tpu.memory_space<vmem>>, vector<2x64xf32>,
    return
  }
}

</mosaic_0001>

<llo_original>
// kernel: tpu_custom_call.1
$region0: #{tpu_custom_call.1}
  #allocation0 [shape = 'u32[]', space=smem, size = 0x4, offset = 0x4, fixed_abs, tag = 'smem constant byte address 0x4 - core index']
  #allocation1 [shape = 'u32[144,128]{1,0:T(1,128)}', space=vmem, size = 0x12000, scoped, tag = 'internal scratch']
  %s0 = inlined_call_operand.vmem [shape: f32[2,32], index: 0, kind: input, shape index: {}]
  %s1 = inlined_call_operand.vmem [shape: f32[2,128], index: 1, kind: input, shape index: {}]
  %s2 = inlined_call_operand.vmem [shape: f32[2,48], index: 2, kind: input, shape index: {}]
  %s3 = inlined_call_operand.vmem [shape: f32[32,128], index: 3, kind: input, shape index: {}]
  %s4 = inlined_call_operand.vmem [shape: f32[128,128], index: 4, kind: input, shape index: {}]
  %s5 = inlined_call_operand.vmem [shape: f32[1,128], index: 5, kind: input, shape index: {}]
  %s6 = inlined_call_operand.vmem [shape: f32[128,64], index: 6, kind: input, shape index: {}]
  %s7 = inlined_call_operand.vmem [shape: f32[1,64], index: 7, kind: input, shape index: {}]
  %s8 = inlined_call_operand.vmem [shape: f32[48,128], index: 8, kind: input, shape index: {}]
  %s9 = inlined_call_operand.vmem [shape: f32[1,128], index: 9, kind: input, shape index: {}]
  %s10 = inlined_call_operand.vmem [shape: f32[128,64], index: 10, kind: input, shape index: {}]
  %s11 = inlined_call_operand.vmem [shape: f32[1,64], index: 11, kind: input, shape index: {}]
  %s12 = inlined_call_operand.hbm [shape: f32[2,64], index: 12, kind: output, shape index: {0}]
  %s13 = inlined_call_operand.hbm [shape: f32[2,64], index: 13, kind: output, shape index: {1}]
  %14 = xla_tuple %s12, %s13
  %s15 = sld [smem:[#allocation0]]
  $region66: #{tpu_custom_call.1} parent=0
    _
  %s17 = ssub.s32 1, %s15
  %s18 = scalar_select 0, %s17, %s15
  $region1: #{tpu_custom_call.1} parent=0
    #allocation2 [shape = 'u8[1024]{0}', space=vmem, size = 0x400, scoped, tag = 'output window, operand 0, single buffered']
    #allocation3 [shape = 's32[1]{0}', space=sflag, size = 0x4, scoped, tag = 'scoped memory for tpu_custom_call.1']
    #allocation4 [shape = 'u8[1024]{0}', space=vmem, size = 0x400, scoped, tag = 'output window, operand 1, single buffered']
    #allocation5 [shape = 's32[1]{0}', space=sflag, size = 0x4, scoped, tag = 'scoped memory for tpu_custom_call.1']
    %19 = vsyncpa [#allocation3], 0
    %20 = vsyncpa [#allocation5], 0
    // Predicated region
    $region2: #{tpu_custom_call.1} parent=1 // pred_check
      _
    $region3: #{tpu_custom_call.1} parent=1 // pred_check_branch
      %22 = sbr.rel (0) target = $region5
    $region4: #{tpu_custom_call.1} parent=1 // pred_region
      _
    $region5: #{tpu_custom_call.1} parent=1 // pred_fallthru
      _
    // Predicated region
    $region6: #{tpu_custom_call.1} parent=1 // pred_check
      _
    $region7: #{tpu_custom_call.1} parent=1 // pred_check_branch
      %24 = sbr.rel (0) target = $region9
    $region8: #{tpu_custom_call.1} parent=1 // pred_region
      _
    $region9: #{tpu_custom_call.1} parent=1 // pred_fallthru
      _
    // Predicated region
    $region10: #{tpu_custom_call.1} parent=1 // pred_check
      _
    $region11: #{tpu_custom_call.1} parent=1 // pred_check_branch
      %26 = sbr.rel (0) target = $region13
    $region12: #{tpu_custom_call.1} parent=1 // pred_region
      _
    $region13: #{tpu_custom_call.1} parent=1 // pred_fallthru
      _
    // Predicated region
    $region14: #{tpu_custom_call.1} parent=1 // pred_check
      _
    $region15: #{tpu_custom_call.1} parent=1 // pred_check_branch
      %28 = sbr.rel (0) target = $region17
    $region16: #{tpu_custom_call.1} parent=1 // pred_region
      _
    $region17: #{tpu_custom_call.1} parent=1 // pred_fallthru
      _
    // Predicated region
    $region18: #{tpu_custom_call.1} parent=1 // pred_check
      _
    $region19: #{tpu_custom_call.1} parent=1 // pred_check_branch
      %30 = sbr.rel (0) target = $region21
    $region20: #{tpu_custom_call.1} parent=1 // pred_region
      _
    $region21: #{tpu_custom_call.1} parent=1 // pred_fallthru
      _
    // Predicated region
    $region22: #{tpu_custom_call.1} parent=1 // pred_check
      _
    $region23: #{tpu_custom_call.1} parent=1 // pred_check_branch
      %32 = sbr.rel (0) target = $region25
    $region24: #{tpu_custom_call.1} parent=1 // pred_region
      _
    $region25: #{tpu_custom_call.1} parent=1 // pred_fallthru
      _
    // Predicated region
    $region26: #{tpu_custom_call.1} parent=1 // pred_check
      _
    $region27: #{tpu_custom_call.1} parent=1 // pred_check_branch
      %34 = sbr.rel (0) target = $region29
    $region28: #{tpu_custom_call.1} parent=1 // pred_region
      _
    $region29: #{tpu_custom_call.1} parent=1 // pred_fallthru
      _
    // Predicated region
    $region30: #{tpu_custom_call.1} parent=1 // pred_check
      _
    $region31: #{tpu_custom_call.1} parent=1 // pred_check_branch
      %36 = sbr.rel (0) target = $region33
    $region32: #{tpu_custom_call.1} parent=1 // pred_region
      _
    $region33: #{tpu_custom_call.1} parent=1 // pred_fallthru
      _
    // Predicated region
    $region34: #{tpu_custom_call.1} parent=1 // pred_check
      _
    $region35: #{tpu_custom_call.1} parent=1 // pred_check_branch
      %38 = sbr.rel (0) target = $region37
    $region36: #{tpu_custom_call.1} parent=1 // pred_region
      _
    $region37: #{tpu_custom_call.1} parent=1 // pred_fallthru
      _
    // Predicated region
    $region38: #{tpu_custom_call.1} parent=1 // pred_check
      _
    $region39: #{tpu_custom_call.1} parent=1 // pred_check_branch
      %40 = sbr.rel (0) target = $region41
    $region40: #{tpu_custom_call.1} parent=1 // pred_region
      _
    $region41: #{tpu_custom_call.1} parent=1 // pred_fallthru
      _
    // Predicated region
    $region42: #{tpu_custom_call.1} parent=1 // pred_check
      _
    $region43: #{tpu_custom_call.1} parent=1 // pred_check_branch
      %42 = sbr.rel (0) target = $region45
    $region44: #{tpu_custom_call.1} parent=1 // pred_region
      _
    $region45: #{tpu_custom_call.1} parent=1 // pred_fallthru
      _
    // Predicated region
    $region46: #{tpu_custom_call.1} parent=1 // pred_check
      _
    $region47: #{tpu_custom_call.1} parent=1 // pred_check_branch
      %44 = sbr.rel (0) target = $region49
    $region48: #{tpu_custom_call.1} parent=1 // pred_region
      _
    $region49: #{tpu_custom_call.1} parent=1 // pred_fallthru
      _
    %v45 = vld [vmem:[%s0] sm:$0x3]
    %v46 = vld [vmem:[%s3] sm:$0xff]
    %v47 = vld [vmem:[%s3 + $0x8] sm:$0xff]
    %v48 = vld [vmem:[%s3 + $0x10] sm:$0xff]
    %v49 = vld [vmem:[%s3 + $0x18] sm:$0xff]
    %v50 = vld [vmem:[%s1] sm:$0x3]
    %v51 = vld [vmem:[%s4] sm:$0xff]
    %v52 = vld [vmem:[%s4 + $0x8] sm:$0xff]
    %v53 = vld [vmem:[%s4 + $0x10] sm:$0xff]
    %v54 = vld [vmem:[%s4 + $0x18] sm:$0xff]
    %v55 = vld [vmem:[%s4 + $0x20] sm:$0xff]
    %v56 = vld [vmem:[%s4 + $0x28] sm:$0xff]
    %v57 = vld [vmem:[%s4 + $0x30] sm:$0xff]
    %v58 = vld [vmem:[%s4 + $0x38] sm:$0xff]
    %v59 = vld [vmem:[%s4 + $0x40] sm:$0xff]
    %v60 = vld [vmem:[%s4 + $0x48] sm:$0xff]
    %v61 = vld [vmem:[%s4 + $0x50] sm:$0xff]
    %v62 = vld [vmem:[%s4 + $0x58] sm:$0xff]
    %v63 = vld [vmem:[%s4 + $0x60] sm:$0xff]
    %v64 = vld [vmem:[%s4 + $0x68] sm:$0xff]
    %v65 = vld [vmem:[%s4 + $0x70] sm:$0xff]
    %v66 = vld [vmem:[%s4 + $0x78] sm:$0xff]
    %67 = vmatprep.subr.mxu0 0.0
    %68 = vmatpush1.msra.mxu0 %v51
    %69 = vmatprep.subr.mxu0 0.0
    %70 = vmatpush1.msra.mxu0 %v52
    %71 = vmatprep.subr.mxu0 0.0
    %72 = vmatpush1.msra.mxu0 %v53
    %73 = vmatprep.subr.mxu0 0.0
    %74 = vmatpush1.msra.mxu0 %v54
    %75 = vmatprep.subr.mxu0 0.0
    %76 = vmatpush1.msra.mxu0 %v55
    %77 = vmatprep.subr.mxu0 0.0
    %78 = vmatpush1.msra.mxu0 %v56
    %79 = vmatprep.subr.mxu0 0.0
    %80 = vmatpush1.msra.mxu0 %v57
    %81 = vmatprep.subr.mxu0 0.0
    %82 = vmatpush1.msra.mxu0 %v58
    %83 = vmatprep.subr.mxu0 0.0
    %84 = vmatpush1.msra.mxu0 %v59
    %85 = vmatprep.subr.mxu0 0.0
    %86 = vmatpush1.msra.mxu0 %v60
    %87 = vmatprep.subr.mxu0 0.0
    %88 = vmatpush1.msra.mxu0 %v61
    %89 = vmatprep.subr.mxu0 0.0
    %90 = vmatpush1.msra.mxu0 %v62
    %91 = vmatprep.subr.mxu0 0.0
    %92 = vmatpush1.msra.mxu0 %v63
    %93 = vmatprep.subr.mxu0 0.0
    %94 = vmatpush1.msra.mxu0 %v64
    %95 = vmatprep.subr.mxu0 0.0
    %96 = vmatpush1.msra.mxu0 %v65
    %97 = vmatprep.subr.mxu0 0.0
    %98 = vmatpush1.msra.mxu0 %v66
    %99 = vmatprep.subr.mxu0 0.0
    %100 = vmatpush1.msra.mxu0 0.0
    %101 = vmatprep.subr.mxu0 0.0
    %102 = vmatpush1.msra.mxu0 0.0
    %103 = vmatprep.subr.mxu0 0.0
    %104 = vmatpush1.msra.mxu0 0.0
    %105 = vmatprep.subr.mxu0 0.0
    %106 = vmatpush1.msra.mxu0 0.0
    %107 = vmatprep.subr.mxu0 0.0
    %108 = vmatpush1.msra.mxu0 0.0
    %109 = vmatprep.subr.mxu0 0.0
    %110 = vmatpush1.msra.mxu0 0.0
    %111 = vmatprep.subr.mxu0 0.0
    %112 = vmatpush1.msra.mxu0 0.0
    %113 = vmatprep.subr.mxu0 0.0
    %114 = vmatpush1.msra.mxu0 0.0
    %115 = vmatprep.subr.mxu0 0.0
    %116 = vmatpush1.msra.mxu0 0.0
    %117 = vmatprep.subr.mxu0 0.0
    %118 = vmatpush1.msra.mxu0 0.0
    %119 = vmatprep.subr.mxu0 0.0
    %120 = vmatpush1.msra.mxu0 0.0
    %121 = vmatprep.subr.mxu0 0.0
    %122 = vmatpush1.msra.mxu0 0.0
    %123 = vmatprep.subr.mxu0 0.0
    %124 = vmatpush1.msra.mxu0 0.0
    %125 = vmatprep.subr.mxu0 0.0
    %126 = vmatpush1.msra.mxu0 0.0
    %127 = vmatprep.subr.mxu0 0.0
    %128 = vmatpush1.msra.mxu0 0.0
    %129 = vmatprep.subr.mxu0 0.0
    %130 = vmatpush1.msra.mxu0 0.0
    %131 = vmatprep.mubr.f32.mxu0 0.0
    %132 = vmatmul.mubr.f32.gmra.mrb[0].mxu0 %v50
    %v133 = vpop.f32.mrb[0].mxu0
    %v134 = vadd.f32 0.0, %v133
    %v135 = vpop.f32.mrb[0].mxu0
    %136 = vdwg.mxu0
    %vm137 = vcmask 261120
    %v139 = vsel %vm137, %v45, 0
    %141 = vmatprep.subr.mxu0 0.0
    %142 = vmatpush1.msra.mxu0 %v46
    %143 = vmatprep.subr.mxu0 0.0
    %144 = vmatpush1.msra.mxu0 %v47
    %145 = vmatprep.subr.mxu0 0.0
    %146 = vmatpush1.msra.mxu0 %v48
    %147 = vmatprep.subr.mxu0 0.0
    %148 = vmatpush1.msra.mxu0 %v49
    %149 = vmatprep.subr.mxu0 0.0
    %150 = vmatpush1.msra.mxu0 0.0
    %151 = vmatprep.subr.mxu0 0.0
    %152 = vmatpush1.msra.mxu0 0.0
    %153 = vmatprep.subr.mxu0 0.0
    %154 = vmatpush1.msra.mxu0 0.0
    %155 = vmatprep.subr.mxu0 0.0
    %156 = vmatpush1.msra.mxu0 0.0
    %157 = vmatprep.subr.mxu0 0.0
    %158 = vmatpush1.msra.mxu0 0.0
    %159 = vmatprep.subr.mxu0 0.0
    %160 = vmatpush1.msra.mxu0 0.0
    %161 = vmatprep.subr.mxu0 0.0
    %162 = vmatpush1.msra.mxu0 0.0
    %163 = vmatprep.subr.mxu0 0.0
    %164 = vmatpush1.msra.mxu0 0.0
    %165 = vmatprep.subr.mxu0 0.0
    %166 = vmatpush1.msra.mxu0 0.0
    %167 = vmatprep.subr.mxu0 0.0
    %168 = vmatpush1.msra.mxu0 0.0
    %169 = vmatprep.subr.mxu0 0.0
    %170 = vmatpush1.msra.mxu0 0.0
    %171 = vmatprep.subr.mxu0 0.0
    %172 = vmatpush1.msra.mxu0 0.0
    %173 = vmatprep.subr.mxu0 0.0
    %174 = vmatpush1.msra.mxu0 0.0
    %175 = vmatprep.subr.mxu0 0.0
    %176 = vmatpush1.msra.mxu0 0.0
    %177 = vmatprep.subr.mxu0 0.0
    %178 = vmatpush1.msra.mxu0 0.0
    %179 = vmatprep.subr.mxu0 0.0
    %180 = vmatpush1.msra.mxu0 0.0
    %181 = vmatprep.subr.mxu0 0.0
    %182 = vmatpush1.msra.mxu0 0.0
    %183 = vmatprep.subr.mxu0 0.0
    %184 = vmatpush1.msra.mxu0 0.0
    %185 = vmatprep.subr.mxu0 0.0
    %186 = vmatpush1.msra.mxu0 0.0
    %187 = vmatprep.subr.mxu0 0.0
    %188 = vmatpush1.msra.mxu0 0.0
    %189 = vmatprep.subr.mxu0 0.0
    %190 = vmatpush1.msra.mxu0 0.0
    %191 = vmatprep.subr.mxu0 0.0
    %192 = vmatpush1.msra.mxu0 0.0
    %193 = vmatprep.subr.mxu0 0.0
    %194 = vmatpush1.msra.mxu0 0.0
    %195 = vmatprep.subr.mxu0 0.0
    %196 = vmatpush1.msra.mxu0 0.0
    %197 = vmatprep.subr.mxu0 0.0
    %198 = vmatpush1.msra.mxu0 0.0
    %199 = vmatprep.subr.mxu0 0.0
    %200 = vmatpush1.msra.mxu0 0.0
    %201 = vmatprep.subr.mxu0 0.0
    %202 = vmatpush1.msra.mxu0 0.0
    %203 = vmatprep.subr.mxu0 0.0
    %204 = vmatpush1.msra.mxu0 0.0
    %205 = vmatprep.mubr.f32.mxu0 0.0
    %206 = vmatmul.mubr.f32.gmra.mrb[0].mxu0 %v139
    %v207 = vpop.f32.mrb[0].mxu0
    %v208 = vadd.f32 %v134, %v207
    %v209 = vpop.f32.mrb[0].mxu0
    %210 = vdwg.mxu0
    %v211 = vld [vmem:[%s5] sm:$0x1]
    %v213 = vlaneseq
    %v214 = vshrl.u32 %v213, 7
    %v215 = vsub.s32 0, %v214
    %v216 = vrot.slane %v211, %v215
    %v218 = vadd.f32 %v208, %v216
    %v219 = vsub.f32 0.0, %v218
    %v220 = vmul.f32 %v219, 1.442695
    %v221 = vpow.pop %v220
    %v222 = vadd.f32 %v221, 1.0
    %v223 = vrcp.pop %v222
    %v224 = vmul.f32 %v218, %v223
    %v225 = vld [vmem:[%s6] sm:$0xff]
    %v226 = vld [vmem:[%s6 + $0x8] sm:$0xff]
    %v227 = vld [vmem:[%s6 + $0x10] sm:$0xff]
    %v228 = vld [vmem:[%s6 + $0x18] sm:$0xff]
    %v229 = vld [vmem:[%s6 + $0x20] sm:$0xff]
    %v230 = vld [vmem:[%s6 + $0x28] sm:$0xff]
    %v231 = vld [vmem:[%s6 + $0x30] sm:$0xff]
    %v232 = vld [vmem:[%s6 + $0x38] sm:$0xff]
    %v233 = vld [vmem:[%s6 + $0x40] sm:$0xff]
    %v234 = vld [vmem:[%s6 + $0x48] sm:$0xff]
    %v235 = vld [vmem:[%s6 + $0x50] sm:$0xff]
    %v236 = vld [vmem:[%s6 + $0x58] sm:$0xff]
    %v237 = vld [vmem:[%s6 + $0x60] sm:$0xff]
    %v238 = vld [vmem:[%s6 + $0x68] sm:$0xff]
    %v239 = vld [vmem:[%s6 + $0x70] sm:$0xff]
    %v240 = vld [vmem:[%s6 + $0x78] sm:$0xff]
    %v241 = vld [vmem:[%s7] sm:$0x1]
    %v243 = vlaneseq
    %v244 = vshrl.u32 %v243, 7
    %v245 = vsub.s32 0, %v244
    %v246 = vrot.slane %v241, %v245
    %248 = vmatprep.subr.mxu0 0.0
    %249 = vmatpush1.msra.mxu0 %v225
    %250 = vmatprep.subr.mxu0 0.0
    %251 = vmatpush1.msra.mxu0 %v226
    %252 = vmatprep.subr.mxu0 0.0
    %253 = vmatpush1.msra.mxu0 %v227
    %254 = vmatprep.subr.mxu0 0.0
    %255 = vmatpush1.msra.mxu0 %v228
    %256 = vmatprep.subr.mxu0 0.0
    %257 = vmatpush1.msra.mxu0 %v229
    %258 = vmatprep.subr.mxu0 0.0
    %259 = vmatpush1.msra.mxu0 %v230
    %260 = vmatprep.subr.mxu0 0.0
    %261 = vmatpush1.msra.mxu0 %v231
    %262 = vmatprep.subr.mxu0 0.0
    %263 = vmatpush1.msra.mxu0 %v232
    %264 = vmatprep.subr.mxu0 0.0
    %265 = vmatpush1.msra.mxu0 %v233
    %266 = vmatprep.subr.mxu0 0.0
    %267 = vmatpush1.msra.mxu0 %v234
    %268 = vmatprep.subr.mxu0 0.0
    %269 = vmatpush1.msra.mxu0 %v235
    %270 = vmatprep.subr.mxu0 0.0
    %271 = vmatpush1.msra.mxu0 %v236
    %272 = vmatprep.subr.mxu0 0.0
    %273 = vmatpush1.msra.mxu0 %v237
    %274 = vmatprep.subr.mxu0 0.0
    %275 = vmatpush1.msra.mxu0 %v238
    %276 = vmatprep.subr.mxu0 0.0
    %277 = vmatpush1.msra.mxu0 %v239
    %278 = vmatprep.subr.mxu0 0.0
    %279 = vmatpush1.msra.mxu0 %v240
    %280 = vmatprep.subr.mxu0 0.0
    %281 = vmatpush1.msra.mxu0 0.0
    %282 = vmatprep.subr.mxu0 0.0
    %283 = vmatpush1.msra.mxu0 0.0
    %284 = vmatprep.subr.mxu0 0.0
    %285 = vmatpush1.msra.mxu0 0.0
    %286 = vmatprep.subr.mxu0 0.0
    %287 = vmatpush1.msra.mxu0 0.0
    %288 = vmatprep.subr.mxu0 0.0
    %289 = vmatpush1.msra.mxu0 0.0
    %290 = vmatprep.subr.mxu0 0.0
    %291 = vmatpush1.msra.mxu0 0.0
    %292 = vmatprep.subr.mxu0 0.0
    %293 = vmatpush1.msra.mxu0 0.0
    %294 = vmatprep.subr.mxu0 0.0
    %295 = vmatpush1.msra.mxu0 0.0
    %296 = vmatprep.subr.mxu0 0.0
    %297 = vmatpush1.msra.mxu0 0.0
    %298 = vmatprep.subr.mxu0 0.0
    %299 = vmatpush1.msra.mxu0 0.0
    %300 = vmatprep.subr.mxu0 0.0
    %301 = vmatpush1.msra.mxu0 0.0
    %302 = vmatprep.subr.mxu0 0.0
    %303 = vmatpush1.msra.mxu0 0.0
    %304 = vmatprep.subr.mxu0 0.0
    %305 = vmatpush1.msra.mxu0 0.0
    %306 = vmatprep.subr.mxu0 0.0
    %307 = vmatpush1.msra.mxu0 0.0
    %308 = vmatprep.subr.mxu0 0.0
    %309 = vmatpush1.msra.mxu0 0.0
    %310 = vmatprep.subr.mxu0 0.0
    %311 = vmatpush1.msra.mxu0 0.0
    %312 = vmatprep.mubr.f32.mxu0 0.0
    %313 = vmatmul.mubr.f32.gmra.mrb[0].mxu0 %v224
    %v314 = vpop.f32.mrb[0].mxu0
    %v315 = vadd.f32 %v246, %v314
    %v316 = vpop.f32.mrb[0].mxu0
    %317 = vdwg.mxu0
    %vm318 = vcmask 517120
    %319 = vst.msk [vmem:[#allocation2] sm:$0x3] %vm318, %v315
    %v320 = vld [vmem:[%s2] sm:$0x3]
    %v321 = vld [vmem:[%s8] sm:$0xff]
    %v322 = vld [vmem:[%s8 + $0x8] sm:$0xff]
    %v323 = vld [vmem:[%s8 + $0x10] sm:$0xff]
    %v324 = vld [vmem:[%s8 + $0x18] sm:$0xff]
    %v325 = vld [vmem:[%s8 + $0x20] sm:$0xff]
    %v326 = vld [vmem:[%s8 + $0x28] sm:$0xff]
    %v327 = vld [vmem:[%s9] sm:$0x1]
    %v329 = vlaneseq
    %v330 = vshrl.u32 %v329, 7
    %v331 = vsub.s32 0, %v330
    %v332 = vrot.slane %v327, %v331
    %vm334 = vcmask 392192
    %v336 = vsel %vm334, %v320, 0
    %338 = vmatprep.subr.mxu0 0.0
    %339 = vmatpush1.msra.mxu0 %v321
    %340 = vmatprep.subr.mxu0 0.0
    %341 = vmatpush1.msra.mxu0 %v322
    %342 = vmatprep.subr.mxu0 0.0
    %343 = vmatpush1.msra.mxu0 %v323
    %344 = vmatprep.subr.mxu0 0.0
    %345 = vmatpush1.msra.mxu0 %v324
    %346 = vmatprep.subr.mxu0 0.0
    %347 = vmatpush1.msra.mxu0 %v325
    %348 = vmatprep.subr.mxu0 0.0
    %349 = vmatpush1.msra.mxu0 %v326
    %350 = vmatprep.subr.mxu0 0.0
    %351 = vmatpush1.msra.mxu0 0.0
    %352 = vmatprep.subr.mxu0 0.0
    %353 = vmatpush1.msra.mxu0 0.0
    %354 = vmatprep.subr.mxu0 0.0
    %355 = vmatpush1.msra.mxu0 0.0
    %356 = vmatprep.subr.mxu0 0.0
    %357 = vmatpush1.msra.mxu0 0.0
    %358 = vmatprep.subr.mxu0 0.0
    %359 = vmatpush1.msra.mxu0 0.0
    %360 = vmatprep.subr.mxu0 0.0
    %361 = vmatpush1.msra.mxu0 0.0
    %362 = vmatprep.subr.mxu0 0.0
    %363 = vmatpush1.msra.mxu0 0.0
    %364 = vmatprep.subr.mxu0 0.0
    %365 = vmatpush1.msra.mxu0 0.0
    %366 = vmatprep.subr.mxu0 0.0
    %367 = vmatpush1.msra.mxu0 0.0
    %368 = vmatprep.subr.mxu0 0.0
    %369 = vmatpush1.msra.mxu0 0.0
    %370 = vmatprep.subr.mxu0 0.0
    %371 = vmatpush1.msra.mxu0 0.0
    %372 = vmatprep.subr.mxu0 0.0
    %373 = vmatpush1.msra.mxu0 0.0
    %374 = vmatprep.subr.mxu0 0.0
    %375 = vmatpush1.msra.mxu0 0.0
    %376 = vmatprep.subr.mxu0 0.0
    %377 = vmatpush1.msra.mxu0 0.0
    %378 = vmatprep.subr.mxu0 0.0
    %379 = vmatpush1.msra.mxu0 0.0
    %380 = vmatprep.subr.mxu0 0.0
    %381 = vmatpush1.msra.mxu0 0.0
    %382 = vmatprep.subr.mxu0 0.0
    %383 = vmatpush1.msra.mxu0 0.0
    %384 = vmatprep.subr.mxu0 0.0
    %385 = vmatpush1.msra.mxu0 0.0
    %386 = vmatprep.subr.mxu0 0.0
    %387 = vmatpush1.msra.mxu0 0.0
    %388 = vmatprep.subr.mxu0 0.0
    %389 = vmatpush1.msra.mxu0 0.0
    %390 = vmatprep.subr.mxu0 0.0
    %391 = vmatpush1.msra.mxu0 0.0
    %392 = vmatprep.subr.mxu0 0.0
    %393 = vmatpush1.msra.mxu0 0.0
    %394 = vmatprep.subr.mxu0 0.0
    %395 = vmatpush1.msra.mxu0 0.0
    %396 = vmatprep.subr.mxu0 0.0
    %397 = vmatpush1.msra.mxu0 0.0
    %398 = vmatprep.subr.mxu0 0.0
    %399 = vmatpush1.msra.mxu0 0.0
    %400 = vmatprep.subr.mxu0 0.0
    %401 = vmatpush1.msra.mxu0 0.0
    %402 = vmatprep.mubr.f32.mxu0 0.0
    %403 = vmatmul.mubr.f32.gmra.mrb[0].mxu0 %v336
    %v404 = vpop.f32.mrb[0].mxu0
    %v405 = vadd.f32 %v332, %v404
    %v406 = vpop.f32.mrb[0].mxu0
    %407 = vdwg.mxu0
    %v408 = vsub.f32 0.0, %v405
    %v409 = vmul.f32 %v408, 1.442695
    %v410 = vpow.pop %v409
    %v411 = vadd.f32 %v410, 1.0
    %v412 = vrcp.pop %v411
    %v413 = vmul.f32 %v405, %v412
    %v414 = vld [vmem:[%s10] sm:$0xff]
    %v415 = vld [vmem:[%s10 + $0x8] sm:$0xff]
    %v416 = vld [vmem:[%s10 + $0x10] sm:$0xff]
    %v417 = vld [vmem:[%s10 + $0x18] sm:$0xff]
    %v418 = vld [vmem:[%s10 + $0x20] sm:$0xff]
    %v419 = vld [vmem:[%s10 + $0x28] sm:$0xff]
    %v420 = vld [vmem:[%s10 + $0x30] sm:$0xff]
    %v421 = vld [vmem:[%s10 + $0x38] sm:$0xff]
    %v422 = vld [vmem:[%s10 + $0x40] sm:$0xff]
    %v423 = vld [vmem:[%s10 + $0x48] sm:$0xff]
    %v424 = vld [vmem:[%s10 + $0x50] sm:$0xff]
    %v425 = vld [vmem:[%s10 + $0x58] sm:$0xff]
    %v426 = vld [vmem:[%s10 + $0x60] sm:$0xff]
    %v427 = vld [vmem:[%s10 + $0x68] sm:$0xff]
    %v428 = vld [vmem:[%s10 + $0x70] sm:$0xff]
    %v429 = vld [vmem:[%s10 + $0x78] sm:$0xff]
    %v430 = vld [vmem:[%s11] sm:$0x1]
    %v432 = vlaneseq
    %v433 = vshrl.u32 %v432, 7
    %v434 = vsub.s32 0, %v433
    %v435 = vrot.slane %v430, %v434
    %437 = vmatprep.subr.mxu0 0.0
    %438 = vmatpush1.msra.mxu0 %v414
    %439 = vmatprep.subr.mxu0 0.0
    %440 = vmatpush1.msra.mxu0 %v415
    %441 = vmatprep.subr.mxu0 0.0
    %442 = vmatpush1.msra.mxu0 %v416
    %443 = vmatprep.subr.mxu0 0.0
    %444 = vmatpush1.msra.mxu0 %v417
    %445 = vmatprep.subr.mxu0 0.0
    %446 = vmatpush1.msra.mxu0 %v418
    %447 = vmatprep.subr.mxu0 0.0
    %448 = vmatpush1.msra.mxu0 %v419
    %449 = vmatprep.subr.mxu0 0.0
    %450 = vmatpush1.msra.mxu0 %v420
    %451 = vmatprep.subr.mxu0 0.0
    %452 = vmatpush1.msra.mxu0 %v421
    %453 = vmatprep.subr.mxu0 0.0
    %454 = vmatpush1.msra.mxu0 %v422
    %455 = vmatprep.subr.mxu0 0.0
    %456 = vmatpush1.msra.mxu0 %v423
    %457 = vmatprep.subr.mxu0 0.0
    %458 = vmatpush1.msra.mxu0 %v424
    %459 = vmatprep.subr.mxu0 0.0
    %460 = vmatpush1.msra.mxu0 %v425
    %461 = vmatprep.subr.mxu0 0.0
    %462 = vmatpush1.msra.mxu0 %v426
    %463 = vmatprep.subr.mxu0 0.0
    %464 = vmatpush1.msra.mxu0 %v427
    %465 = vmatprep.subr.mxu0 0.0
    %466 = vmatpush1.msra.mxu0 %v428
    %467 = vmatprep.subr.mxu0 0.0
    %468 = vmatpush1.msra.mxu0 %v429
    %469 = vmatprep.subr.mxu0 0.0
    %470 = vmatpush1.msra.mxu0 0.0
    %471 = vmatprep.subr.mxu0 0.0
    %472 = vmatpush1.msra.mxu0 0.0
    %473 = vmatprep.subr.mxu0 0.0
    %474 = vmatpush1.msra.mxu0 0.0
    %475 = vmatprep.subr.mxu0 0.0
    %476 = vmatpush1.msra.mxu0 0.0
    %477 = vmatprep.subr.mxu0 0.0
    %478 = vmatpush1.msra.mxu0 0.0
    %479 = vmatprep.subr.mxu0 0.0
    %480 = vmatpush1.msra.mxu0 0.0
    %481 = vmatprep.subr.mxu0 0.0
    %482 = vmatpush1.msra.mxu0 0.0
    %483 = vmatprep.subr.mxu0 0.0
    %484 = vmatpush1.msra.mxu0 0.0
    %485 = vmatprep.subr.mxu0 0.0
    %486 = vmatpush1.msra.mxu0 0.0
    %487 = vmatprep.subr.mxu0 0.0
    %488 = vmatpush1.msra.mxu0 0.0
    %489 = vmatprep.subr.mxu0 0.0
    %490 = vmatpush1.msra.mxu0 0.0
    %491 = vmatprep.subr.mxu0 0.0
    %492 = vmatpush1.msra.mxu0 0.0
    %493 = vmatprep.subr.mxu0 0.0
    %494 = vmatpush1.msra.mxu0 0.0
    %495 = vmatprep.subr.mxu0 0.0
    %496 = vmatpush1.msra.mxu0 0.0
    %497 = vmatprep.subr.mxu0 0.0
    %498 = vmatpush1.msra.mxu0 0.0
    %499 = vmatprep.subr.mxu0 0.0
    %500 = vmatpush1.msra.mxu0 0.0
    %501 = vmatprep.mubr.f32.mxu0 0.0
    %502 = vmatmul.mubr.f32.gmra.mrb[0].mxu0 %v413
    %v503 = vpop.f32.mrb[0].mxu0
    %v504 = vadd.f32 %v435, %v503
    %v505 = vpop.f32.mrb[0].mxu0
    %506 = vdwg.mxu0
    %507 = vst.msk [vmem:[#allocation4] sm:$0x3] %vm318, %v504
    // Predicated region
    $region50: #{tpu_custom_call.1} parent=1 // pred_check
      _
    $region51: #{tpu_custom_call.1} parent=1 // pred_check_branch
      %509 = sbr.rel (0) target = $region53
    $region52: #{tpu_custom_call.1} parent=1 // pred_region
      %s511 = ssub.s32 32, 32
      %512 = vsyncadd [#allocation3], %s511
      %s514 = sshll.u32 [#allocation2], 4
      %s515 = int_to_ptr.vmem [resolvable:$true] %s514
      %517 = dma.vmem_to_hbm [thread:$0]  %s515, 32, %s12, [#allocation3]
    $region53: #{tpu_custom_call.1} parent=1 // pred_fallthru
      _
    // Predicated region
    $region54: #{tpu_custom_call.1} parent=1 // pred_check
      _
    $region55: #{tpu_custom_call.1} parent=1 // pred_check_branch
      %519 = sbr.rel (0) target = $region57
    $region56: #{tpu_custom_call.1} parent=1 // pred_region
      %s521 = ssub.s32 32, 32
      %522 = vsyncadd [#allocation5], %s521
      %s524 = sshll.u32 [#allocation4], 4
      %s525 = int_to_ptr.vmem [resolvable:$true] %s524
      %527 = dma.vmem_to_hbm [thread:$0]  %s525, 32, %s13, [#allocation5]
    $region57: #{tpu_custom_call.1} parent=1 // pred_fallthru
      _
    // Predicated region
    $region58: #{tpu_custom_call.1} parent=1 // pred_check
      _
    $region59: #{tpu_custom_call.1} parent=1 // pred_check_branch
      %529 = sbr.rel (0) target = $region61
    $region60: #{tpu_custom_call.1} parent=1 // pred_region
      %530 = dma.done [#allocation3], 32
    $region61: #{tpu_custom_call.1} parent=1 // pred_fallthru
      _
    // Predicated region
    $region62: #{tpu_custom_call.1} parent=1 // pred_check
      _
    $region63: #{tpu_custom_call.1} parent=1 // pred_check_branch
      %532 = sbr.rel (0) target = $region65
    $region64: #{tpu_custom_call.1} parent=1 // pred_region
      %533 = dma.done [#allocation5], 32
    $region65: #{tpu_custom_call.1} parent=1 // pred_fallthru
      _
    %534 = vsyncpa [#allocation3], 1
    %535 = vsyncpa [#allocation5], 1

</llo_original>
